<compile_context>
chip_gen: v5e
topology: v5e:2x2
jax: 0.10.0
libtpu: 0.0.40
codegen_flags: <defaults>
</compile_context>

<pallas_src>
import jax
import jax.numpy as jnp
from jax.experimental import pallas as pl
from jax.experimental.pallas import tpu as pltpu

LANES = 128
SUBLANES = 8


def _round_up(x, m):
    return ((x + m - 1) // m) * m


def _tensorcores_per_chip():
    # v7x has 2 TensorCores per chip; v5e / v6e have 1. Best-effort detection.
    try:
        kind = jax.devices()[0].device_kind.lower()
    except Exception:
        return 1
    return 2 if ("v7" in kind or "7x" in kind) else 1


def _make_partial_kernel(tr, inner, rows_main, needs_mask):
    """Grid (ns, inner): accumulate sum((pred-y)^2) of this split's row range
    into a resident (8,128) f32 output block (one block per split)."""

    def kernel(pred_ref, y_ref, o_ref):
        c = pl.program_id(0)
        i = pl.program_id(1)

        @pl.when(i == 0)
        def _():
            o_ref[...] = jnp.zeros_like(o_ref)

        # Cast per-tile in VMEM (inputs stream from HBM in native dtype).
        d = pred_ref[...].astype(jnp.float32) - y_ref[...].astype(jnp.float32)
        sq = d * d

        def vreg_sum(x):
            # (tr,128) -> (tr//8, 8, 128) -> sum over leading axis: VALU-only
            # vreg adds into an (8,128) partial; the cross-lane reduce is
            # deferred to the tiny jnp epilogue.
            return jnp.sum(x.reshape(tr // SUBLANES, SUBLANES, LANES), axis=0)

        if not needs_mask:
            # Fully tile-aligned input: no masking anywhere (compile-time).
            o_ref[...] += vreg_sum(sq)
        else:
            row0 = (c * inner + i) * tr
            is_full = row0 + tr <= rows_main

            @pl.when(is_full)
            def _():
                # Hot path: interior blocks pay zero masking cost.
                o_ref[...] += vreg_sum(sq)

            @pl.when(jnp.logical_not(is_full))
            def _():
                # Boundary (or clamped-duplicate) block: zero out rows past the
                # true row count before accumulating. OOB rows hold garbage
                # data but the select discards them.
                row_ids = row0 + jax.lax.broadcasted_iota(
                    jnp.int32, (tr, LANES), 0)
                o_ref[...] += vreg_sum(jnp.where(row_ids < rows_main, sq, 0.0))

    return kernel


def rmse_loss(pred, y, *, tile_rows=None, num_splits=None,
              min_kernel_elems=128 * 1024):
    """sqrt(mean((pred - y)**2)) — matches torch.sqrt(nn.MSELoss()(pred, y))."""
    assert pred.shape == y.shape, "pred and y must have the same shape"
    n = pred.size

    out_dtype = jnp.result_type(pred.dtype, y.dtype)
    if not jnp.issubdtype(out_dtype, jnp.floating):
        out_dtype = jnp.float32

    flat_pred = pred.reshape(-1)
    flat_y = y.reshape(-1)

    itemsize = max(jnp.dtype(pred.dtype).itemsize, jnp.dtype(y.dtype).itemsize)
    rows_main = n // LANES
    # Packed-sublane granularity: f32 -> 8, bf16 -> 16, int8/fp8 -> 32.
    sub_mult = SUBLANES * max(1, 4 // itemsize)

    # Tiny-input fast path: kernel fixed cost dominates below ~1 tile of data.
    if n < max(1, min_kernel_elems) or rows_main < sub_mult:
        d = flat_pred.astype(jnp.float32) - flat_y.astype(jnp.float32)
        return jnp.sqrt(jnp.mean(d * d)).astype(out_dtype)

    main_elems = rows_main * LANES
    tail = n - main_elems  # < 128 elements, handled in jnp below.

    # ~1 MiB per input block regardless of dtype; tr <= rows_main and a
    # multiple of the packed-sublane granularity.
    if tile_rows is None:
        tile_rows = max(512, (1 << 20) // (LANES * itemsize))
    tr = min(_round_up(tile_rows, sub_mult), (rows_main // sub_mult) * sub_mult)

    total_blocks = pl.cdiv(rows_main, tr)

    cores = _tensorcores_per_chip()
    ns = cores if num_splits is None else num_splits
    ns = max(1, min(ns, total_blocks))
    inner = pl.cdiv(total_blocks, ns)

    # Masking needed only if the last block is ragged or the split rounds the
    # block count up (clamped, fully-masked duplicate boundary steps).
    needs_mask = (rows_main % tr != 0) or (ns * inner != total_blocks)

    # Lane-aligned main slab in NATIVE dtype. When n is a multiple of 128 this
    # is a pure reshape (no HBM copy, no padding).
    if tail:
        # TODO(synk): the <128-element tail forces a prefix slice here (rare);
        # avoiding that copy entirely would need a manual pl.ANY/DMA path.
        pred_main = flat_pred[:main_elems]
        y_main = flat_y[:main_elems]
    else:
        pred_main, y_main = flat_pred, flat_y
    pred2d = pred_main.reshape(rows_main, LANES)
    y2d = y_main.reshape(rows_main, LANES)

    def in_index(c, i):
        # Clamp so duplicate boundary steps (total_blocks % ns != 0) keep the
        # DMA in-bounds; their contribution is masked to zero in-kernel.
        return (jnp.minimum(c * inner + i, total_blocks - 1), 0)

    lead_sem = pltpu.CORE_PARALLEL if (ns > 1 and cores > 1) else pltpu.ARBITRARY

    kernel = _make_partial_kernel(tr, inner, rows_main, needs_mask)

    partials = pl.pallas_call(
        kernel,
        out_shape=jax.ShapeDtypeStruct((ns * SUBLANES, LANES), jnp.float32),
        grid_spec=pltpu.PrefetchScalarGridSpec(
            num_scalar_prefetch=0,
            grid=(ns, inner),
            in_specs=[
                pl.BlockSpec((tr, LANES), in_index),
                pl.BlockSpec((tr, LANES), in_index),
            ],
            out_specs=pl.BlockSpec((SUBLANES, LANES), lambda c, i: (c, 0)),
        ),
        compiler_params=pltpu.CompilerParams(
            dimension_semantics=(lead_sem, pltpu.ARBITRARY),
            vmem_limit_bytes=32 * 1024 * 1024,
        ),
        cost_estimate=pl.CostEstimate(
            flops=3 * main_elems,
            transcendentals=0,
            bytes_accessed=2 * main_elems * itemsize,
        ),
    )(pred2d, y2d)

    total = jnp.sum(partials)
    if tail:
        dt = (flat_pred[main_elems:].astype(jnp.float32)
              - flat_y[main_elems:].astype(jnp.float32))
        total = total + jnp.sum(dt * dt)

    # Tiny scalar epilogue: divide by the TRUE element count, sqrt.
    return jnp.sqrt(total / jnp.float32(n)).astype(out_dtype)


if __name__ == "__main__":
    key = jax.random.PRNGKey(0)
    k1, k2, k3, k4, k5, k6 = jax.random.split(key, 6)

    # 1) Small NCHW prediction/target pair — force the kernel path.
    pred = jax.random.normal(k1, (2, 4, 16, 16), dtype=jnp.float32)
    y = jax.random.normal(k2, (2, 4, 16, 16), dtype=jnp.float32)
    loss = jax.block_until_ready(rmse_loss(pred, y, min_kernel_elems=0))
    ref = jnp.sqrt(jnp.mean((pred - y) ** 2))
    assert jnp.allclose(loss, ref, rtol=1e-5, atol=1e-6), (loss, ref)

    # 2) Ragged case: partial final tile (in-kernel mask) + <128-elem lane tail.
    pred2 = jax.random.normal(k3, (3, 5, 7, 130), dtype=jnp.float32)
    y2 = jax.random.normal(k4, (3, 5, 7, 130), dtype=jnp.float32)
    loss2 = jax.block_until_ready(rmse_loss(pred2, y2, min_kernel_elems=0))
    ref2 = jnp.sqrt(jnp.mean((pred2 - y2) ** 2))
    assert jnp.allclose(loss2, ref2, rtol=1e-5, atol=1e-6), (loss2, ref2)

    # 3) Multi-block accumulation with a partial last block (default settings,
    #    no padding / no copy path since n % 128 == 0).
    pred3 = jax.random.normal(k5, (2, 8, 160, 128), dtype=jnp.float32)
    y3 = jax.random.normal(k6, (2, 8, 160, 128), dtype=jnp.float32)
    loss3 = jax.block_until_ready(rmse_loss(pred3, y3))
    ref3 = jnp.sqrt(jnp.mean((pred3 - y3) ** 2))
    assert jnp.allclose(loss3, ref3, rtol=1e-4, atol=1e-6), (loss3, ref3)

    # 4) Tiny-input jnp fast path (default threshold).
    small_p = jax.random.normal(k1, (3, 5, 7), dtype=jnp.float32)
    small_y = jax.random.normal(k2, (3, 5, 7), dtype=jnp.float32)
    loss4 = jax.block_until_ready(rmse_loss(small_p, small_y))
    ref4 = jnp.sqrt(jnp.mean((small_p - small_y) ** 2))
    assert jnp.allclose(loss4, ref4, rtol=1e-5, atol=1e-6), (loss4, ref4)

    print("KERNEL_OK")
</pallas_src>

<mosaic_0001>
module attributes {stable_mosaic.version = 11 : i64} {
  func.func @kernel(%arg0: i32, %arg1: i32, %arg2: memref<16x128xf32, #tpu.memory_space<vmem>>, %arg3: memref<16x128xf32, #tpu.memory_space<vmem>>, %arg4: memref<8x128xf32, #tpu.memory_space<vmem>>) attributes {dimension_semantics = [#tpu.dimension_semantics<arbitrary>, #tpu.dimension_semantics<arbitrary>], iteration_bounds = array<i64: 1, 1>, scalar_prefetch = 0 : i64, scratch_operands = 0 : i64, tpu.core_type = #tpu.core_type<tc>, window_params = [{transform_indices = @transform_0, window_bounds = array<i64: 16, 128>}, {transform_indices = @transform_1, window_bounds = array<i64: 16, 128>}, {transform_indices = @transform_2, window_bounds = array<i64: 8, 128>}]} {
    %c0_i32 = arith.constant 0 : i32
    %0 = arith.cmpi eq, %arg1, %c0_i32 : i32
    %1 = arith.extui %0 : i1 to i32
    %c0_i32_0 = arith.constant 0 : i32
    %2 = arith.cmpi ne, %1, %c0_i32_0 : i32
    scf.if %2 {
      %cst_8 = arith.constant 0.000000e+00 : f32
      %12 = vector.broadcast %cst_8 : f32 to vector<8x128xf32>
      %c0_9 = arith.constant 0 : index
      %c0_10 = arith.constant 0 : index
      %13 = vector.load %arg4[%c0_9, %c0_10] : memref<8x128xf32, #tpu.memory_space<vmem>>, vector<8x128xf32>
      tpu.vector_store %arg4[%c0_9, %c0_10], %12 {strides = array<i32>} : memref<8x128xf32, #tpu.memory_space<vmem>>, vector<8x128xf32>,
    } else {
    }
    %c0 = arith.constant 0 : index
    %c0_1 = arith.constant 0 : index
    %3 = vector.load %arg2[%c0, %c0_1] : memref<16x128xf32, #tpu.memory_space<vmem>>, vector<16x128xf32>
    %c0_2 = arith.constant 0 : index
    %c0_3 = arith.constant 0 : index
    %4 = vector.load %arg3[%c0_2, %c0_3] : memref<16x128xf32, #tpu.memory_space<vmem>>, vector<16x128xf32>
    %5 = arith.subf %3, %4 : vector<16x128xf32>
    %6 = arith.mulf %5, %5 : vector<16x128xf32>
    %c0_4 = arith.constant 0 : index
    %c0_5 = arith.constant 0 : index
    %7 = vector.load %arg4[%c0_4, %c0_5] : memref<8x128xf32, #tpu.memory_space<vmem>>, vector<8x128xf32>
    %8 = vector.shape_cast %6 : vector<16x128xf32> to vector<2x8x128xf32>
    %cst = arith.constant dense<0.000000e+00> : vector<8x128xf32>
    %9 = vector.multi_reduction <add>, %8, %cst [0] : vector<2x8x128xf32> to vector<8x128xf32>
    %10 = arith.addf %7, %9 : vector<8x128xf32>
    %c0_6 = arith.constant 0 : index
    %c0_7 = arith.constant 0 : index
    %11 = vector.load %arg4[%c0_6, %c0_7] : memref<8x128xf32, #tpu.memory_space<vmem>>, vector<8x128xf32>
    tpu.vector_store %arg4[%c0_6, %c0_7], %10 {strides = array<i32>} : memref<8x128xf32, #tpu.memory_space<vmem>>, vector<8x128xf32>,
    return
  }
  func.func @transform_0(%arg0: i32, %arg1: i32) -> (i32, i32) {
    %c1_i32 = arith.constant 1 : i32
    %0 = arith.muli %arg0, %c1_i32 : i32
    %1 = arith.addi %0, %arg1 : i32
    %c0_i32 = arith.constant 0 : i32
    %2 = arith.minsi %1, %c0_i32 : i32
    %c0_i32_0 = arith.constant 0 : i32
    %c0_i32_1 = arith.constant 0 : i32
    return %2, %c0_i32_0 : i32, i32
  }
  func.func @transform_1(%arg0: i32, %arg1: i32) -> (i32, i32) {
    %c1_i32 = arith.constant 1 : i32
    %0 = arith.muli %arg0, %c1_i32 : i32
    %1 = arith.addi %0, %arg1 : i32
    %c0_i32 = arith.constant 0 : i32
    %2 = arith.minsi %1, %c0_i32 : i32
    %c0_i32_0 = arith.constant 0 : i32
    %c0_i32_1 = arith.constant 0 : i32
    return %2, %c0_i32_0 : i32, i32
  }
  func.func @transform_2(%arg0: i32, %arg1: i32) -> (i32, i32) {
    %c0_i32 = arith.constant 0 : i32
    %c0_i32_0 = arith.constant 0 : i32
    return %arg0, %c0_i32 : i32, i32
  }
}

</mosaic_0001>

<llo_original>
// kernel: tpu_custom_call.1
$region0: #{tpu_custom_call.1}
  #allocation0 [shape = 'u32[]', space=smem, size = 0x4, offset = 0x4, fixed_abs, tag = 'smem constant byte address 0x4 - core index']
  #allocation1 [shape = 'u32[72,128]{1,0:T(1,128)}', space=vmem, size = 0x9000, scoped, tag = 'internal scratch']
  %s0 = inlined_call_operand.hbm [shape: f32[16,128], index: 0, kind: input, shape index: {}]
  %s1 = inlined_call_operand.hbm [shape: f32[16,128], index: 1, kind: input, shape index: {}]
  %s2 = inlined_call_operand.hbm [shape: f32[8,128], index: 2, kind: output, shape index: {}]
  %s3 = sld [smem:[#allocation0]]
  $region30: #{tpu_custom_call.1} parent=0
    _
  %s5 = ssub.s32 1, %s3
  %s6 = scalar_select 0, %s5, %s3
  $region1: #{tpu_custom_call.1} parent=0
    #allocation2 [shape = 'u8[8192]{0}', space=vmem, size = 0x2000, scoped, tag = 'input window, operand 0, single buffered']
    #allocation3 [shape = 's32[1]{0}', space=sflag, size = 0x4, scoped, tag = 'scoped memory for tpu_custom_call.1']
    #allocation4 [shape = 's32[1]{0}', space=sflag, size = 0x4, scoped, tag = 'scoped memory for tpu_custom_call.1']
    #allocation5 [shape = 'u8[8192]{0}', space=vmem, size = 0x2000, scoped, tag = 'input window, operand 1, single buffered']
    #allocation6 [shape = 's32[1]{0}', space=sflag, size = 0x4, scoped, tag = 'scoped memory for tpu_custom_call.1']
    #allocation7 [shape = 'u8[4096]{0}', space=vmem, size = 0x1000, scoped, tag = 'output window, operand 0, single buffered']
    %7 = vsyncpa [#allocation3], 0
    %8 = vsyncpa [#allocation6], 0
    %9 = vsyncpa [#allocation4], 0
    // Predicated region
    $region2: #{tpu_custom_call.1} parent=1 // pred_check
      _
    $region3: #{tpu_custom_call.1} parent=1 // pred_check_branch
      %11 = sbr.rel (0) target = $region5
    $region4: #{tpu_custom_call.1} parent=1 // pred_region
      %s12 = sadd.s32 0, 0
      %p13 = scmp.lt.s32.totalorder %s12, 0
      %s14 = scalar_select %p13, %s12, 0
      %s15 = smul.u32 2, %s14
      %17 = vsyncadd [#allocation3], 0
      %s18 = smul.addr %s15, 8
      %s19 = scalar_lea.hbm %s0, %s18
      %s20 = sshll.u32 %s19, 4
      %s21 = int_to_ptr.hbm [resolvable:$true] %s20
      %s22 = sshll.u32 [#allocation2], 4
      %s23 = int_to_ptr.vmem [resolvable:$true] %s22
      %28 = dma.hbm_to_vmem [thread:$0]  %s21, 256, %s23, [#allocation3], 128, 128, 8
    $region5: #{tpu_custom_call.1} parent=1 // pred_fallthru
      _
    // Predicated region
    $region6: #{tpu_custom_call.1} parent=1 // pred_check
      _
    $region7: #{tpu_custom_call.1} parent=1 // pred_check_branch
      %30 = sbr.rel (0) target = $region9
    $region8: #{tpu_custom_call.1} parent=1 // pred_region
      %s31 = sadd.s32 0, 0
      %p32 = scmp.lt.s32.totalorder %s31, 0
      %s33 = scalar_select %p32, %s31, 0
      %s34 = smul.u32 2, %s33
      %36 = vsyncadd [#allocation6], 0
      %s37 = smul.addr %s34, 8
      %s38 = scalar_lea.hbm %s1, %s37
      %s39 = sshll.u32 %s38, 4
      %s40 = int_to_ptr.hbm [resolvable:$true] %s39
      %s41 = sshll.u32 [#allocation5], 4
      %s42 = int_to_ptr.vmem [resolvable:$true] %s41
      %47 = dma.hbm_to_vmem [thread:$0]  %s40, 256, %s42, [#allocation6], 128, 128, 8
    $region9: #{tpu_custom_call.1} parent=1 // pred_fallthru
      _
    // Predicated region
    $region10: #{tpu_custom_call.1} parent=1 // pred_check
      _
    $region11: #{tpu_custom_call.1} parent=1 // pred_check_branch
      %49 = sbr.rel (0) target = $region13
    $region12: #{tpu_custom_call.1} parent=1 // pred_region
      %51 = dma.done [#allocation3], 256
    $region13: #{tpu_custom_call.1} parent=1 // pred_fallthru
      _
    // Predicated region
    $region14: #{tpu_custom_call.1} parent=1 // pred_check
      _
    $region15: #{tpu_custom_call.1} parent=1 // pred_check_branch
      %53 = sbr.rel (0) target = $region17
    $region16: #{tpu_custom_call.1} parent=1 // pred_region
      %55 = dma.done [#allocation6], 256
    $region17: #{tpu_custom_call.1} parent=1 // pred_fallthru
      _
    %s56 = sadd.s32 0, 0
    %p57 = scmp.lt.s32.totalorder %s56, 0
    %s58 = scalar_select %p57, %s56, 0
    %s59 = smul.u32 2, %s58
    %s60 = sadd.s32 0, 0
    %p61 = scmp.lt.s32.totalorder %s60, 0
    %s62 = scalar_select %p61, %s60, 0
    %s63 = smul.u32 2, %s62
    %p64 = scmp.eq.s32.totalorder 0, 0
    // Predicated region
    $region18: #{tpu_custom_call.1} parent=1 // pred_check
      %p65 = pneg %p64
    $region19: #{tpu_custom_call.1} parent=1 // pred_check_branch
      %67 = sbr.rel (%p65) target = $region21
    $region20: #{tpu_custom_call.1} parent=1 // pred_region
      %68 = vst [vmem:[#allocation7] sm:$0xff] 0.0
    $region21: #{tpu_custom_call.1} parent=1 // pred_fallthru
      _
    %v69 = vld [vmem:[#allocation2] sm:$0xff]
    %v70 = vld [vmem:[#allocation2 + $0x8] sm:$0xff]
    %v71 = vld [vmem:[#allocation5] sm:$0xff]
    %v72 = vld [vmem:[#allocation5 + $0x8] sm:$0xff]
    %v73 = vsub.f32 %v69, %v71
    %v74 = vsub.f32 %v70, %v72
    %v75 = vmul.f32 %v73, %v73
    %v76 = vmul.f32 %v74, %v74
    %v77 = vld [vmem:[#allocation7] sm:$0xff]
    %v78 = vadd.f32 %v75, %v76
    %v79 = vadd.f32 %v77, %v78
    %80 = vst [vmem:[#allocation7] sm:$0xff] %v79
    // Predicated region
    $region22: #{tpu_custom_call.1} parent=1 // pred_check
      _
    $region23: #{tpu_custom_call.1} parent=1 // pred_check_branch
      %82 = sbr.rel (0) target = $region25
    $region24: #{tpu_custom_call.1} parent=1 // pred_region
      %84 = vsyncadd [#allocation4], 0
      %s86 = sshll.u32 [#allocation7], 4
      %s87 = int_to_ptr.vmem [resolvable:$true] %s86
      %s88 = sshll.u32 %s2, 4
      %s89 = int_to_ptr.hbm [resolvable:$true] %s88
      %91 = dma.vmem_to_hbm [thread:$0]  %s87, 128, %s89, [#allocation4]
    $region25: #{tpu_custom_call.1} parent=1 // pred_fallthru
      _
    // Predicated region
    $region26: #{tpu_custom_call.1} parent=1 // pred_check
      _
    $region27: #{tpu_custom_call.1} parent=1 // pred_check_branch
      %93 = sbr.rel (0) target = $region29
    $region28: #{tpu_custom_call.1} parent=1 // pred_region
      %95 = dma.done [#allocation4], 128
    $region29: #{tpu_custom_call.1} parent=1 // pred_fallthru
      _
    %96 = vsyncpa [#allocation3], 1
    %97 = vsyncpa [#allocation6], 1
    %98 = vsyncpa [#allocation4], 1

</llo_original>
